<compile_context>
chip_gen: v7x
topology: tpu7x:2x2x1
jax: 0.10.0
libtpu: 0.0.40
codegen_flags: <defaults>
</compile_context>

<pallas_src>
import math
from functools import partial

import jax
import jax.numpy as jnp
from jax.experimental import pallas as pl
from jax.experimental.pallas import tpu as pltpu


# ----------------------------------------------------------------------------
# Kernel
# ----------------------------------------------------------------------------
def _fused_mlp_kernel(n_hidden, *refs):
    """One batch-tile of the fused (force ++ torque) MLP chain."""
    if n_hidden > 0:
        (x_ref, w_in_ref, b_in_ref, w_hid_ref, b_hid_ref,
         w_out_ref, b_out_ref, o_ref) = refs
    else:
        x_ref, w_in_ref, b_in_ref, w_out_ref, b_out_ref, o_ref = refs
        w_hid_ref = b_hid_ref = None

    cdt = w_in_ref.dtype  # compute dtype of matmul operands (bf16 by default)

    # First Linear + ReLU (f32 accumulation / elementwise).
    h = jnp.dot(x_ref[...], w_in_ref[...], preferred_element_type=jnp.float32)
    h = jnp.maximum(h + b_in_ref[...], 0.0)

    # Hidden Linear -> (Dropout == identity in eval) -> ReLU, statically unrolled.
    for i in range(n_hidden):
        h = jnp.dot(h.astype(cdt), w_hid_ref[i],
                    preferred_element_type=jnp.float32)
        h = jnp.maximum(h + b_hid_ref[i], 0.0)

    # Output Linear (no activation).
    out = jnp.dot(h.astype(cdt), w_out_ref[...],
                  preferred_element_type=jnp.float32)
    o_ref[...] = (out + b_out_ref[...]).astype(o_ref.dtype)


# ----------------------------------------------------------------------------
# Wrapper
# ----------------------------------------------------------------------------
def fused_mlp_forward(x2d, fused_params, *, tile_b=512,
                      compute_dtype=jnp.bfloat16):
    """Run the fused (force ++ torque) MLP on a 2D (rows, in_dim) input."""
    w_in, b_in, w_hid, b_hid, w_out, b_out = fused_params
    batch, in_dim = x2d.shape
    out2 = w_out.shape[-1]
    n_hidden = int(w_hid.shape[0])

    # Batch tile: full batch when small, else a multiple of 8 rows (f32 sublane).
    tb = batch if batch <= tile_b else max((tile_b // 8) * 8, 8)
    grid = (pl.cdiv(batch, tb),)

    # bf16 matmul operands; biases stay f32 (added in f32 after the MXU).
    x_c = x2d.astype(compute_dtype)
    w_in_c = w_in.astype(compute_dtype)
    w_out_c = w_out.astype(compute_dtype)
    b_in_c = b_in.astype(jnp.float32)
    b_out_c = b_out.astype(jnp.float32)

    def resident(shape):
        # Whole array as one block, same block for every grid step (weights
        # stay in VMEM across the batch loop).
        return pl.BlockSpec(shape, lambda i, _n=len(shape): (0,) * _n)

    in_specs = [pl.BlockSpec((tb, in_dim), lambda i: (i, 0)),
                resident(w_in_c.shape), resident(b_in_c.shape)]
    args = [x_c, w_in_c, b_in_c]

    if n_hidden > 0:
        w_hid_c = w_hid.astype(compute_dtype)
        b_hid_c = b_hid.astype(jnp.float32)
        in_specs += [resident(w_hid_c.shape), resident(b_hid_c.shape)]
        args += [w_hid_c, b_hid_c]

    in_specs += [resident(w_out_c.shape), resident(b_out_c.shape)]
    args += [w_out_c, b_out_c]

    # TODO(synk): for large hidden_dim / n_layers, stream w_hid one layer per
    # grid step ("arbitrary" axis + VMEM accumulator) instead of keeping the
    # full stack resident (v7x: 64 MiB physical VMEM), and set vmem_limit_bytes.
    return pl.pallas_call(
        partial(_fused_mlp_kernel, n_hidden),
        out_shape=jax.ShapeDtypeStruct((batch, out2), x2d.dtype),
        grid=grid,
        in_specs=in_specs,
        out_specs=pl.BlockSpec((tb, out2), lambda i: (i, 0)),
        compiler_params=pltpu.CompilerParams(
            dimension_semantics=("parallel",)),
    )(*args)


def nn_forward(x, fused_params, out_dim, mode="append", tile_b=512,
               compute_dtype=jnp.bfloat16):
    """Forward pass matching NN.forward: returns (force, torque)."""
    in_dim = x.shape[-1]
    lead = x.shape[:-1]
    x2d = x.reshape(-1, in_dim)
    y = fused_mlp_forward(x2d, fused_params, tile_b=tile_b,
                          compute_dtype=compute_dtype)
    y = y.reshape(lead + (y.shape[-1],))
    force, torque = y[..., :out_dim], y[..., out_dim:]
    if mode == "stack":
        # PyTorch: .mean(dim=-2) — implies a (..., N, features) input.
        force = force.mean(axis=-2)
        torque = torque.mean(axis=-2)
    return force, torque


# ----------------------------------------------------------------------------
# Parameter construction (PyTorch nn.Linear default init), then fusion
# ----------------------------------------------------------------------------
def init_linear(key, fan_in, fan_out, dtype=jnp.float32):
    """U(-1/sqrt(fan_in), 1/sqrt(fan_in)); stored as (in_features, out_features)."""
    kw, kb = jax.random.split(key)
    bound = 1.0 / math.sqrt(fan_in)
    w = jax.random.uniform(kw, (fan_in, fan_out), dtype, -bound, bound)
    b = jax.random.uniform(kb, (1, fan_out), dtype, -bound, bound)
    return w, b


def init_net(key, in_dim, hidden_dim, out_dim, n_layers, dtype=jnp.float32):
    keys = jax.random.split(key, n_layers + 1)
    w_in, b_in = init_linear(keys[0], in_dim, hidden_dim, dtype)
    hid_ws, hid_bs = [], []
    for i in range(n_layers - 1):
        w, b = init_linear(keys[1 + i], hidden_dim, hidden_dim, dtype)
        hid_ws.append(w)
        hid_bs.append(b)
    if n_layers - 1 > 0:
        w_hid = jnp.stack(hid_ws, axis=0)            # (n_layers-1, hid, hid)
        b_hid = jnp.stack(hid_bs, axis=0)            # (n_layers-1, 1, hid)
    else:
        w_hid = jnp.zeros((0, hidden_dim, hidden_dim), dtype)
        b_hid = jnp.zeros((0, 1, hidden_dim), dtype)
    w_out, b_out = init_linear(keys[n_layers], hidden_dim, out_dim, dtype)
    return (w_in, b_in, w_hid, b_hid, w_out, b_out)


def fuse_two_nets(force_params, torque_params):
    """Lane-concatenate force_net and torque_net into one MLP:
    first-layer weights column-concatenated, hidden/output layers block-diagonal."""
    wf_in, bf_in, wf_hid, bf_hid, wf_out, bf_out = force_params
    wt_in, bt_in, wt_hid, bt_hid, wt_out, bt_out = torque_params
    hid = wf_in.shape[1]
    n_hidden = wf_hid.shape[0]

    w_in = jnp.concatenate([wf_in, wt_in], axis=1)        # (in, 2h)
    b_in = jnp.concatenate([bf_in, bt_in], axis=1)        # (1, 2h)

    if n_hidden > 0:
        z = jnp.zeros_like(wf_hid)
        w_hid = jnp.concatenate([
            jnp.concatenate([wf_hid, z], axis=2),
            jnp.concatenate([z, wt_hid], axis=2)], axis=1)  # (L-1, 2h, 2h)
        b_hid = jnp.concatenate([bf_hid, bt_hid], axis=2)   # (L-1, 1, 2h)
    else:
        w_hid = jnp.zeros((0, 2 * hid, 2 * hid), wf_in.dtype)
        b_hid = jnp.zeros((0, 1, 2 * hid), wf_in.dtype)

    zf = jnp.zeros_like(wf_out)
    zt = jnp.zeros_like(wt_out)
    w_out = jnp.concatenate([
        jnp.concatenate([wf_out, zf], axis=1),
        jnp.concatenate([zt, wt_out], axis=1)], axis=0)     # (2h, 2*out)
    b_out = jnp.concatenate([bf_out, bt_out], axis=1)       # (1, 2*out)
    return (w_in, b_in, w_hid, b_hid, w_out, b_out)


def _mlp_ref(x, params):
    """Pure-JAX f32 reference of one MLP (eval mode)."""
    w_in, b_in, w_hid, b_hid, w_out, b_out = params
    h = jnp.maximum(x @ w_in + b_in, 0.0)
    for i in range(w_hid.shape[0]):
        h = jnp.maximum(h @ w_hid[i] + b_hid[i], 0.0)
    return h @ w_out + b_out


# ----------------------------------------------------------------------------
# Demo / self-test
# ----------------------------------------------------------------------------
if __name__ == "__main__":
    batch, in_dim, hidden_dim, out_dim, n_layers = 8, 16, 32, 8, 3

    key = jax.random.PRNGKey(0)
    k_x, k_force, k_torque, k_big = jax.random.split(key, 4)

    x = jax.random.normal(k_x, (batch, in_dim), jnp.float32)
    force_params = init_net(k_force, in_dim, hidden_dim, out_dim, n_layers)
    torque_params = init_net(k_torque, in_dim, hidden_dim, out_dim, n_layers)
    fused_params = fuse_two_nets(force_params, torque_params)

    # mode="append" on a 2D input (single-tile grid).
    fwd = jax.jit(partial(nn_forward, out_dim=out_dim, mode="append"))
    force, torque = fwd(x, fused_params)
    jax.block_until_ready((force, torque))
    assert force.shape == (batch, out_dim)
    assert torque.shape == (batch, out_dim)

    # Sanity check against pure-JAX f32 reference (bf16 matmul tolerance).
    f_ref = _mlp_ref(x, force_params)
    t_ref = _mlp_ref(x, torque_params)
    assert jnp.allclose(force, f_ref, atol=5e-2, rtol=5e-2)
    assert jnp.allclose(torque, t_ref, atol=5e-2, rtol=5e-2)

    # Multi-tile batch grid (exercise the pipelined "parallel" axis).
    xb = jax.random.normal(k_big, (256, in_dim), jnp.float32)
    fwd_tiled = jax.jit(partial(nn_forward, out_dim=out_dim, mode="append",
                                tile_b=128))
    fb, tb_out = fwd_tiled(xb, fused_params)
    jax.block_until_ready((fb, tb_out))
    assert fb.shape == (256, out_dim) and tb_out.shape == (256, out_dim)
    assert jnp.allclose(fb, _mlp_ref(xb, force_params), atol=5e-2, rtol=5e-2)
    assert jnp.allclose(tb_out, _mlp_ref(xb, torque_params), atol=5e-2, rtol=5e-2)

    # mode="stack" on a 3D (batch, N, in_dim) input -> (batch, out_dim).
    x3 = jax.random.normal(k_x, (2, 4, in_dim), jnp.float32)
    fwd_stack = jax.jit(partial(nn_forward, out_dim=out_dim, mode="stack"))
    f3, t3 = fwd_stack(x3, fused_params)
    jax.block_until_ready((f3, t3))
    assert f3.shape == (2, out_dim) and t3.shape == (2, out_dim)

    print("KERNEL_OK")
</pallas_src>

<mosaic_0001>
module attributes {stable_mosaic.version = 11 : i64} {
  func.func @_fused_mlp_kernel(%arg0: i32, %arg1: memref<8x16xbf16, #tpu.memory_space<vmem>>, %arg2: memref<16x64xbf16, #tpu.memory_space<vmem>>, %arg3: memref<1x64xf32, #tpu.memory_space<vmem>>, %arg4: memref<2x64x64xbf16, #tpu.memory_space<vmem>>, %arg5: memref<2x1x64xf32, #tpu.memory_space<vmem>>, %arg6: memref<64x16xbf16, #tpu.memory_space<vmem>>, %arg7: memref<1x16xf32, #tpu.memory_space<vmem>>, %arg8: memref<8x16xf32, #tpu.memory_space<vmem>>) attributes {dimension_semantics = [#tpu.dimension_semantics<parallel>], iteration_bounds = array<i64: 1>, scalar_prefetch = 0 : i64, scratch_operands = 0 : i64, tpu.core_type = #tpu.core_type<tc>, window_params = [{transform_indices = @transform_0, window_bounds = array<i64: 8, 16>}, {pipeline_mode = #tpu.pipeline_mode<synchronous>, transform_indices = @transform_1, window_bounds = array<i64: 16, 64>}, {pipeline_mode = #tpu.pipeline_mode<synchronous>, transform_indices = @transform_2, window_bounds = array<i64: 1, 64>}, {pipeline_mode = #tpu.pipeline_mode<synchronous>, transform_indices = @transform_3, window_bounds = array<i64: 2, 64, 64>}, {pipeline_mode = #tpu.pipeline_mode<synchronous>, transform_indices = @transform_4, window_bounds = array<i64: 2, 1, 64>}, {pipeline_mode = #tpu.pipeline_mode<synchronous>, transform_indices = @transform_5, window_bounds = array<i64: 64, 16>}, {pipeline_mode = #tpu.pipeline_mode<synchronous>, transform_indices = @transform_6, window_bounds = array<i64: 1, 16>}, {transform_indices = @transform_7, window_bounds = array<i64: 8, 16>}]} {
    %c0 = arith.constant 0 : index
    %c0_0 = arith.constant 0 : index
    %0 = vector.load %arg1[%c0, %c0_0] : memref<8x16xbf16, #tpu.memory_space<vmem>>, vector<8x16xbf16>
    %c0_1 = arith.constant 0 : index
    %c0_2 = arith.constant 0 : index
    %1 = vector.load %arg2[%c0_1, %c0_2] : memref<16x64xbf16, #tpu.memory_space<vmem>>, vector<16x64xbf16>
    %cst = arith.constant dense<0.000000e+00> : vector<8x64xf32>
    %2 = tpu.matmul %0, %1, %cst {dimension_numbers = #tpu.dot_dimension_numbers<[1], [0], [0], [1], [0, 0, 1, 1], [], []>} : vector<8x16xbf16>, vector<16x64xbf16>, vector<8x64xf32> -> vector<8x64xf32>
    %c0_3 = arith.constant 0 : index
    %c0_4 = arith.constant 0 : index
    %3 = vector.load %arg3[%c0_3, %c0_4] : memref<1x64xf32, #tpu.memory_space<vmem>>, vector<1x64xf32>
    %4 = vector.broadcast %3 : vector<1x64xf32> to vector<8x64xf32>
    %5 = arith.addf %2, %4 : vector<8x64xf32>
    %cst_5 = arith.constant 0.000000e+00 : f32
    %6 = vector.broadcast %cst_5 : f32 to vector<8x64xf32>
    %7 = arith.maximumf %5, %6 : vector<8x64xf32>
    %8 = arith.truncf %7 : vector<8x64xf32> to vector<8x64xbf16>
    %c0_6 = arith.constant 0 : index
    %c0_7 = arith.constant 0 : index
    %c0_8 = arith.constant 0 : index
    %9 = vector.load %arg4[%c0_6, %c0_7, %c0_8] : memref<2x64x64xbf16, #tpu.memory_space<vmem>>, vector<1x64x64xbf16>
    %10 = vector.shape_cast %9 : vector<1x64x64xbf16> to vector<64x64xbf16>
    %cst_9 = arith.constant dense<0.000000e+00> : vector<8x64xf32>
    %11 = tpu.matmul %8, %10, %cst_9 {dimension_numbers = #tpu.dot_dimension_numbers<[1], [0], [0], [1], [0, 0, 1, 1], [], []>} : vector<8x64xbf16>, vector<64x64xbf16>, vector<8x64xf32> -> vector<8x64xf32>
    %c0_10 = arith.constant 0 : index
    %c0_11 = arith.constant 0 : index
    %c0_12 = arith.constant 0 : index
    %12 = vector.load %arg5[%c0_10, %c0_11, %c0_12] : memref<2x1x64xf32, #tpu.memory_space<vmem>>, vector<1x1x64xf32>
    %13 = vector.shape_cast %12 : vector<1x1x64xf32> to vector<1x64xf32>
    %14 = vector.broadcast %13 : vector<1x64xf32> to vector<8x64xf32>
    %15 = arith.addf %11, %14 : vector<8x64xf32>
    %cst_13 = arith.constant 0.000000e+00 : f32
    %16 = vector.broadcast %cst_13 : f32 to vector<8x64xf32>
    %17 = arith.maximumf %15, %16 : vector<8x64xf32>
    %18 = arith.truncf %17 : vector<8x64xf32> to vector<8x64xbf16>
    %c1 = arith.constant 1 : index
    %c0_14 = arith.constant 0 : index
    %c0_15 = arith.constant 0 : index
    %19 = vector.load %arg4[%c1, %c0_14, %c0_15] : memref<2x64x64xbf16, #tpu.memory_space<vmem>>, vector<1x64x64xbf16>
    %20 = vector.shape_cast %19 : vector<1x64x64xbf16> to vector<64x64xbf16>
    %cst_16 = arith.constant dense<0.000000e+00> : vector<8x64xf32>
    %21 = tpu.matmul %18, %20, %cst_16 {dimension_numbers = #tpu.dot_dimension_numbers<[1], [0], [0], [1], [0, 0, 1, 1], [], []>} : vector<8x64xbf16>, vector<64x64xbf16>, vector<8x64xf32> -> vector<8x64xf32>
    %c1_17 = arith.constant 1 : index
    %c0_18 = arith.constant 0 : index
    %c0_19 = arith.constant 0 : index
    %22 = vector.load %arg5[%c1_17, %c0_18, %c0_19] : memref<2x1x64xf32, #tpu.memory_space<vmem>>, vector<1x1x64xf32>
    %23 = vector.shape_cast %22 : vector<1x1x64xf32> to vector<1x64xf32>
    %24 = vector.broadcast %23 : vector<1x64xf32> to vector<8x64xf32>
    %25 = arith.addf %21, %24 : vector<8x64xf32>
    %cst_20 = arith.constant 0.000000e+00 : f32
    %26 = vector.broadcast %cst_20 : f32 to vector<8x64xf32>
    %27 = arith.maximumf %25, %26 : vector<8x64xf32>
    %28 = arith.truncf %27 : vector<8x64xf32> to vector<8x64xbf16>
    %c0_21 = arith.constant 0 : index
    %c0_22 = arith.constant 0 : index
    %29 = vector.load %arg6[%c0_21, %c0_22] : memref<64x16xbf16, #tpu.memory_space<vmem>>, vector<64x16xbf16>
    %cst_23 = arith.constant dense<0.000000e+00> : vector<8x16xf32>
    %30 = tpu.matmul %28, %29, %cst_23 {dimension_numbers = #tpu.dot_dimension_numbers<[1], [0], [0], [1], [0, 0, 1, 1], [], []>} : vector<8x64xbf16>, vector<64x16xbf16>, vector<8x16xf32> -> vector<8x16xf32>
    %c0_24 = arith.constant 0 : index
    %c0_25 = arith.constant 0 : index
    %31 = vector.load %arg7[%c0_24, %c0_25] : memref<1x16xf32, #tpu.memory_space<vmem>>, vector<1x16xf32>
    %32 = vector.broadcast %31 : vector<1x16xf32> to vector<8x16xf32>
    %33 = arith.addf %30, %32 : vector<8x16xf32>
    %c0_26 = arith.constant 0 : index
    %c0_27 = arith.constant 0 : index
    %34 = vector.load %arg8[%c0_26, %c0_27] : memref<8x16xf32, #tpu.memory_space<vmem>>, vector<8x16xf32>
    tpu.vector_store %arg8[%c0_26, %c0_27], %33 {strides = array<i32>} : memref<8x16xf32, #tpu.memory_space<vmem>>, vector<8x16xf32>,
    return
  }
  func.func @transform_0(%arg0: i32) -> (i32, i32) {
    %c0_i32 = arith.constant 0 : i32
    %c0_i32_0 = arith.constant 0 : i32
    return %arg0, %c0_i32 : i32, i32
  }
  func.func @transform_1(%arg0: i32) -> (i32, i32) {
    %c0_i32 = arith.constant 0 : i32
    %c0_i32_0 = arith.constant 0 : i32
    %c0_i32_1 = arith.constant 0 : i32
    return %c0_i32, %c0_i32_0 : i32, i32
  }
  func.func @transform_2(%arg0: i32) -> (i32, i32) {
    %c0_i32 = arith.constant 0 : i32
    %c0_i32_0 = arith.constant 0 : i32
    %c0_i32_1 = arith.constant 0 : i32
    return %c0_i32, %c0_i32_0 : i32, i32
  }
  func.func @transform_3(%arg0: i32) -> (i32, i32, i32) {
    %c0_i32 = arith.constant 0 : i32
    %c0_i32_0 = arith.constant 0 : i32
    %c0_i32_1 = arith.constant 0 : i32
    %c0_i32_2 = arith.constant 0 : i32
    return %c0_i32, %c0_i32_0, %c0_i32_1 : i32, i32, i32
  }
  func.func @transform_4(%arg0: i32) -> (i32, i32, i32) {
    %c0_i32 = arith.constant 0 : i32
    %c0_i32_0 = arith.constant 0 : i32
    %c0_i32_1 = arith.constant 0 : i32
    %c0_i32_2 = arith.constant 0 : i32
    return %c0_i32, %c0_i32_0, %c0_i32_1 : i32, i32, i32
  }
  func.func @transform_5(%arg0: i32) -> (i32, i32) {
    %c0_i32 = arith.constant 0 : i32
    %c0_i32_0 = arith.constant 0 : i32
    %c0_i32_1 = arith.constant 0 : i32
    return %c0_i32, %c0_i32_0 : i32, i32
  }
  func.func @transform_6(%arg0: i32) -> (i32, i32) {
    %c0_i32 = arith.constant 0 : i32
    %c0_i32_0 = arith.constant 0 : i32
    %c0_i32_1 = arith.constant 0 : i32
    return %c0_i32, %c0_i32_0 : i32, i32
  }
  func.func @transform_7(%arg0: i32) -> (i32, i32) {
    %c0_i32 = arith.constant 0 : i32
    %c0_i32_0 = arith.constant 0 : i32
    return %arg0, %c0_i32 : i32, i32
  }
}

</mosaic_0001>

<llo_original>
// kernel: nn_forward.1
$region0: #{nn_forward.1}
  #allocation0 [shape = 'u32[]', space=smem, size = 0x4, offset = 0x4, fixed_abs, tag = 'smem constant byte address 0x4 - core index']
  #allocation1 [shape = 'u32[144,128]{1,0:T(1,128)}', space=vmem, size = 0x12000, scoped, tag = 'internal scratch']
  %s0 = inlined_call_operand.vmem [shape: bf16[8,16], index: 0, kind: input, shape index: {}]
  %s1 = inlined_call_operand.vmem [shape: bf16[16,64], index: 1, kind: input, shape index: {}]
  %s2 = inlined_call_operand.vmem [shape: f32[1,64], index: 2, kind: input, shape index: {}]
  %s3 = inlined_call_operand.vmem [shape: bf16[2,64,64], index: 3, kind: input, shape index: {}]
  %s4 = inlined_call_operand.vmem [shape: f32[2,1,64], index: 4, kind: input, shape index: {}]
  %s5 = inlined_call_operand.vmem [shape: bf16[64,16], index: 5, kind: input, shape index: {}]
  %s6 = inlined_call_operand.vmem [shape: f32[1,16], index: 6, kind: input, shape index: {}]
  %s7 = inlined_call_operand.vmem [shape: f32[8,16], index: 7, kind: output, shape index: {}]
  %s8 = sld [smem:[#allocation0]]
  $region38: #{nn_forward.1} parent=0
    _
  %s10 = ssub.s32 1, %s8
  %s11 = scalar_select 0, %s10, %s8
  // Predicated region
  $region2: #{nn_forward.1} parent=0 // pred_check
    _
  $region3: #{nn_forward.1} parent=0 // pred_check_branch
    %13 = sbr.rel (0) target = $region5
  $region4: #{nn_forward.1} parent=0 // pred_region
    _
  $region5: #{nn_forward.1} parent=0 // pred_fallthru
    _
  // Predicated region
  $region6: #{nn_forward.1} parent=0 // pred_check
    _
  $region7: #{nn_forward.1} parent=0 // pred_check_branch
    %15 = sbr.rel (0) target = $region9
  $region8: #{nn_forward.1} parent=0 // pred_region
    _
  $region9: #{nn_forward.1} parent=0 // pred_fallthru
    _
  // Predicated region
  $region10: #{nn_forward.1} parent=0 // pred_check
    _
  $region11: #{nn_forward.1} parent=0 // pred_check_branch
    %17 = sbr.rel (0) target = $region13
  $region12: #{nn_forward.1} parent=0 // pred_region
    _
  $region13: #{nn_forward.1} parent=0 // pred_fallthru
    _
  // Predicated region
  $region14: #{nn_forward.1} parent=0 // pred_check
    _
  $region15: #{nn_forward.1} parent=0 // pred_check_branch
    %19 = sbr.rel (0) target = $region17
  $region16: #{nn_forward.1} parent=0 // pred_region
    _
  $region17: #{nn_forward.1} parent=0 // pred_fallthru
    _
  // Predicated region
  $region18: #{nn_forward.1} parent=0 // pred_check
    _
  $region19: #{nn_forward.1} parent=0 // pred_check_branch
    %21 = sbr.rel (0) target = $region21
  $region20: #{nn_forward.1} parent=0 // pred_region
    _
  $region21: #{nn_forward.1} parent=0 // pred_fallthru
    _
  // Predicated region
  $region22: #{nn_forward.1} parent=0 // pred_check
    _
  $region23: #{nn_forward.1} parent=0 // pred_check_branch
    %23 = sbr.rel (0) target = $region25
  $region24: #{nn_forward.1} parent=0 // pred_region
    _
  $region25: #{nn_forward.1} parent=0 // pred_fallthru
    _
  // Predicated region
  $region26: #{nn_forward.1} parent=0 // pred_check
    _
  $region27: #{nn_forward.1} parent=0 // pred_check_branch
    %25 = sbr.rel (0) target = $region29
  $region28: #{nn_forward.1} parent=0 // pred_region
    _
  $region29: #{nn_forward.1} parent=0 // pred_fallthru
    _
  %v27 = vld [vmem:[%s0] sm:$0xf]
  %v28 = vld [vmem:[%s1] sm:$0xf]
  %v29 = vld [vmem:[%s1 + $0x4] sm:$0xf]
  %v30 = vld [vmem:[%s2] sm:$0x1]
  %v32 = vlaneseq
  %v33 = vshrl.u32 %v32, 7
  %v34 = vsub.s32 0, %v33
  %v35 = vrot.slane %v30, %v34
  %v39 = vunpack.c.l.b16 %v28
  %v40 = vunpack.c.l.b16 %v29
  %v41 = vpack.c.b16 %v40, %v39
  %vm43 = vcmask 130048
  %v45 = vsel %vm43, %v27, 0
  %47 = vmatprep.subr.bf16.mxu0 0
  %48 = vmatpush1.bf16.msra.mxu0 %v41
  %49 = vmatprep.subr.bf16.mxu0 0
  %50 = vmatpush1.bf16.msra.mxu0 0
  %51 = vmatprep.subr.bf16.mxu0 0
  %52 = vmatpush1.bf16.msra.mxu0 0
  %53 = vmatprep.subr.bf16.mxu0 0
  %54 = vmatpush1.bf16.msra.mxu0 0
  %55 = vmatprep.subr.bf16.mxu0 0
  %56 = vmatpush1.bf16.msra.mxu0 0
  %57 = vmatprep.subr.bf16.mxu0 0
  %58 = vmatpush1.bf16.msra.mxu0 0
  %59 = vmatprep.subr.bf16.mxu0 0
  %60 = vmatpush1.bf16.msra.mxu0 0
  %61 = vmatprep.subr.bf16.mxu0 0
  %62 = vmatpush1.bf16.msra.mxu0 0
  %63 = vmatprep.subr.bf16.mxu0 0
  %64 = vmatpush1.bf16.msra.mxu0 0
  %65 = vmatprep.subr.bf16.mxu0 0
  %66 = vmatpush1.bf16.msra.mxu0 0
  %67 = vmatprep.subr.bf16.mxu0 0
  %68 = vmatpush1.bf16.msra.mxu0 0
  %69 = vmatprep.subr.bf16.mxu0 0
  %70 = vmatpush1.bf16.msra.mxu0 0
  %71 = vmatprep.subr.bf16.mxu0 0
  %72 = vmatpush1.bf16.msra.mxu0 0
  %73 = vmatprep.subr.bf16.mxu0 0
  %74 = vmatpush1.bf16.msra.mxu0 0
  %75 = vmatprep.subr.bf16.mxu0 0
  %76 = vmatpush1.bf16.msra.mxu0 0
  %77 = vmatprep.subr.bf16.mxu0 0
  %78 = vmatpush1.bf16.msra.mxu0 0
  %79 = vmatprep.mubr.bf16.mxu0 0
  %80 = vmatmul.mubr.bf16.gmra.mrb[0].mxu0 %v45
  %v81 = vpop.f32.mrb[0].mxu0
  %v82 = vadd.f32 %v35, %v81
  %v83 = vpop.f32.mrb[0].mxu0
  %v84 = vpop.f32.mrb[0].mxu0
  %v85 = vpop.f32.mrb[0].mxu0
  %86 = vdwg.mxu0
  %v87 = vmax.f32 %v82, 0.0
  %v88 = vpack.c.bf16 %v87, %v87
  %v89 = vld [vmem:[%s3] sm:$0xf]
  %v90 = vld [vmem:[%s3 + $0x4] sm:$0xf]
  %v91 = vld [vmem:[%s3 + $0x8] sm:$0xf]
  %v92 = vld [vmem:[%s3 + $0xc] sm:$0xf]
  %v93 = vld [vmem:[%s3 + $0x10] sm:$0xf]
  %v94 = vld [vmem:[%s3 + $0x14] sm:$0xf]
  %v95 = vld [vmem:[%s3 + $0x18] sm:$0xf]
  %v96 = vld [vmem:[%s3 + $0x1c] sm:$0xf]
  %v97 = vld [vmem:[%s4] sm:$0x1]
  %v99 = vlaneseq
  %v100 = vshrl.u32 %v99, 7
  %v101 = vsub.s32 0, %v100
  %v102 = vrot.slane %v97, %v101
  %v112 = vunpack.c.l.b16 %v89
  %v113 = vunpack.c.l.b16 %v90
  %v114 = vunpack.c.l.b16 %v91
  %v115 = vunpack.c.l.b16 %v92
  %v116 = vunpack.c.l.b16 %v93
  %v117 = vunpack.c.l.b16 %v94
  %v118 = vunpack.c.l.b16 %v95
  %v119 = vunpack.c.l.b16 %v96
  %v120 = vpack.c.b16 %v113, %v112
  %v121 = vpack.c.b16 %v115, %v114
  %v122 = vpack.c.b16 %v117, %v116
  %v123 = vpack.c.b16 %v119, %v118
  %vm128 = vcmask 523264
  %v130 = vsel %vm128, %v88, 0
  %132 = vmatprep.subr.bf16.mxu0 0
  %133 = vmatpush1.bf16.msra.mxu0 %v120
  %134 = vmatprep.subr.bf16.mxu0 0
  %135 = vmatpush1.bf16.msra.mxu0 %v121
  %136 = vmatprep.subr.bf16.mxu0 0
  %137 = vmatpush1.bf16.msra.mxu0 %v122
  %138 = vmatprep.subr.bf16.mxu0 0
  %139 = vmatpush1.bf16.msra.mxu0 %v123
  %140 = vmatprep.subr.bf16.mxu0 0
  %141 = vmatpush1.bf16.msra.mxu0 0
  %142 = vmatprep.subr.bf16.mxu0 0
  %143 = vmatpush1.bf16.msra.mxu0 0
  %144 = vmatprep.subr.bf16.mxu0 0
  %145 = vmatpush1.bf16.msra.mxu0 0
  %146 = vmatprep.subr.bf16.mxu0 0
  %147 = vmatpush1.bf16.msra.mxu0 0
  %148 = vmatprep.subr.bf16.mxu0 0
  %149 = vmatpush1.bf16.msra.mxu0 0
  %150 = vmatprep.subr.bf16.mxu0 0
  %151 = vmatpush1.bf16.msra.mxu0 0
  %152 = vmatprep.subr.bf16.mxu0 0
  %153 = vmatpush1.bf16.msra.mxu0 0
  %154 = vmatprep.subr.bf16.mxu0 0
  %155 = vmatpush1.bf16.msra.mxu0 0
  %156 = vmatprep.subr.bf16.mxu0 0
  %157 = vmatpush1.bf16.msra.mxu0 0
  %158 = vmatprep.subr.bf16.mxu0 0
  %159 = vmatpush1.bf16.msra.mxu0 0
  %160 = vmatprep.subr.bf16.mxu0 0
  %161 = vmatpush1.bf16.msra.mxu0 0
  %162 = vmatprep.subr.bf16.mxu0 0
  %163 = vmatpush1.bf16.msra.mxu0 0
  %164 = vmatprep.mubr.bf16.mxu0 0
  %165 = vmatmul.mubr.bf16.gmra.mrb[0].mxu0 %v130
  %v166 = vpop.f32.mrb[0].mxu0
  %v167 = vadd.f32 %v102, %v166
  %v168 = vpop.f32.mrb[0].mxu0
  %v169 = vpop.f32.mrb[0].mxu0
  %v170 = vpop.f32.mrb[0].mxu0
  %171 = vdwg.mxu0
  %v172 = vmax.f32 %v167, 0.0
  %v173 = vpack.c.bf16 %v172, %v172
  %s174 = scalar_lea.vmem %s3, 32
  %v175 = vld [vmem:[%s174] sm:$0xf]
  %v176 = vld [vmem:[%s174 + $0x4] sm:$0xf]
  %v177 = vld [vmem:[%s174 + $0x8] sm:$0xf]
  %v178 = vld [vmem:[%s174 + $0xc] sm:$0xf]
  %v179 = vld [vmem:[%s174 + $0x10] sm:$0xf]
  %v180 = vld [vmem:[%s174 + $0x14] sm:$0xf]
  %v181 = vld [vmem:[%s174 + $0x18] sm:$0xf]
  %v182 = vld [vmem:[%s174 + $0x1c] sm:$0xf]
  %s183 = scalar_lea.vmem %s4, 1
  %v184 = vld [vmem:[%s183] sm:$0x1]
  %v186 = vlaneseq
  %v187 = vshrl.u32 %v186, 7
  %v188 = vsub.s32 0, %v187
  %v189 = vrot.slane %v184, %v188
  %v199 = vunpack.c.l.b16 %v175
  %v200 = vunpack.c.l.b16 %v176
  %v201 = vunpack.c.l.b16 %v177
  %v202 = vunpack.c.l.b16 %v178
  %v203 = vunpack.c.l.b16 %v179
  %v204 = vunpack.c.l.b16 %v180
  %v205 = vunpack.c.l.b16 %v181
  %v206 = vunpack.c.l.b16 %v182
  %v207 = vpack.c.b16 %v200, %v199
  %v208 = vpack.c.b16 %v202, %v201
  %v209 = vpack.c.b16 %v204, %v203
  %v210 = vpack.c.b16 %v206, %v205
  %v216 = vsel %vm128, %v173, 0
  %218 = vmatprep.subr.bf16.mxu0 0
  %219 = vmatpush1.bf16.msra.mxu0 %v207
  %220 = vmatprep.subr.bf16.mxu0 0
  %221 = vmatpush1.bf16.msra.mxu0 %v208
  %222 = vmatprep.subr.bf16.mxu0 0
  %223 = vmatpush1.bf16.msra.mxu0 %v209
  %224 = vmatprep.subr.bf16.mxu0 0
  %225 = vmatpush1.bf16.msra.mxu0 %v210
  %226 = vmatprep.subr.bf16.mxu0 0
  %227 = vmatpush1.bf16.msra.mxu0 0
  %228 = vmatprep.subr.bf16.mxu0 0
  %229 = vmatpush1.bf16.msra.mxu0 0
  %230 = vmatprep.subr.bf16.mxu0 0
  %231 = vmatpush1.bf16.msra.mxu0 0
  %232 = vmatprep.subr.bf16.mxu0 0
  %233 = vmatpush1.bf16.msra.mxu0 0
  %234 = vmatprep.subr.bf16.mxu0 0
  %235 = vmatpush1.bf16.msra.mxu0 0
  %236 = vmatprep.subr.bf16.mxu0 0
  %237 = vmatpush1.bf16.msra.mxu0 0
  %238 = vmatprep.subr.bf16.mxu0 0
  %239 = vmatpush1.bf16.msra.mxu0 0
  %240 = vmatprep.subr.bf16.mxu0 0
  %241 = vmatpush1.bf16.msra.mxu0 0
  %242 = vmatprep.subr.bf16.mxu0 0
  %243 = vmatpush1.bf16.msra.mxu0 0
  %244 = vmatprep.subr.bf16.mxu0 0
  %245 = vmatpush1.bf16.msra.mxu0 0
  %246 = vmatprep.subr.bf16.mxu0 0
  %247 = vmatpush1.bf16.msra.mxu0 0
  %248 = vmatprep.subr.bf16.mxu0 0
  %249 = vmatpush1.bf16.msra.mxu0 0
  %250 = vmatprep.mubr.bf16.mxu0 0
  %251 = vmatmul.mubr.bf16.gmra.mrb[0].mxu0 %v216
  %v252 = vpop.f32.mrb[0].mxu0
  %v253 = vadd.f32 %v189, %v252
  %v254 = vpop.f32.mrb[0].mxu0
  %v255 = vpop.f32.mrb[0].mxu0
  %v256 = vpop.f32.mrb[0].mxu0
  %257 = vdwg.mxu0
  %v258 = vmax.f32 %v253, 0.0
  %v259 = vpack.c.bf16 %v258, %v258
  %v260 = vld [vmem:[%s5] sm:$0xf]
  %v261 = vld [vmem:[%s5 + $0x4] sm:$0xf]
  %v262 = vld [vmem:[%s5 + $0x8] sm:$0xf]
  %v263 = vld [vmem:[%s5 + $0xc] sm:$0xf]
  %v264 = vld [vmem:[%s5 + $0x10] sm:$0xf]
  %v265 = vld [vmem:[%s5 + $0x14] sm:$0xf]
  %v266 = vld [vmem:[%s5 + $0x18] sm:$0xf]
  %v267 = vld [vmem:[%s5 + $0x1c] sm:$0xf]
  %v268 = vld [vmem:[%s6] sm:$0x1]
  %v270 = vlaneseq
  %v271 = vshrl.u32 %v270, 7
  %v272 = vsub.s32 0, %v271
  %v273 = vrot.slane %v268, %v272
  %v283 = vunpack.c.l.b16 %v260
  %v284 = vunpack.c.l.b16 %v261
  %v285 = vunpack.c.l.b16 %v262
  %v286 = vunpack.c.l.b16 %v263
  %v287 = vunpack.c.l.b16 %v264
  %v288 = vunpack.c.l.b16 %v265
  %v289 = vunpack.c.l.b16 %v266
  %v290 = vunpack.c.l.b16 %v267
  %v291 = vpack.c.b16 %v284, %v283
  %v292 = vpack.c.b16 %v286, %v285
  %v293 = vpack.c.b16 %v288, %v287
  %v294 = vpack.c.b16 %v290, %v289
  %v300 = vsel %vm128, %v259, 0
  %302 = vmatprep.subr.bf16.mxu0 0
  %303 = vmatpush1.bf16.msra.mxu0 %v291
  %304 = vmatprep.subr.bf16.mxu0 0
  %305 = vmatpush1.bf16.msra.mxu0 %v292
  %306 = vmatprep.subr.bf16.mxu0 0
  %307 = vmatpush1.bf16.msra.mxu0 %v293
  %308 = vmatprep.subr.bf16.mxu0 0
  %309 = vmatpush1.bf16.msra.mxu0 %v294
  %310 = vmatprep.subr.bf16.mxu0 0
  %311 = vmatpush1.bf16.msra.mxu0 0
  %312 = vmatprep.subr.bf16.mxu0 0
  %313 = vmatpush1.bf16.msra.mxu0 0
  %314 = vmatprep.subr.bf16.mxu0 0
  %315 = vmatpush1.bf16.msra.mxu0 0
  %316 = vmatprep.subr.bf16.mxu0 0
  %317 = vmatpush1.bf16.msra.mxu0 0
  %318 = vmatprep.subr.bf16.mxu0 0
  %319 = vmatpush1.bf16.msra.mxu0 0
  %320 = vmatprep.subr.bf16.mxu0 0
  %321 = vmatpush1.bf16.msra.mxu0 0
  %322 = vmatprep.subr.bf16.mxu0 0
  %323 = vmatpush1.bf16.msra.mxu0 0
  %324 = vmatprep.subr.bf16.mxu0 0
  %325 = vmatpush1.bf16.msra.mxu0 0
  %326 = vmatprep.subr.bf16.mxu0 0
  %327 = vmatpush1.bf16.msra.mxu0 0
  %328 = vmatprep.subr.bf16.mxu0 0
  %329 = vmatpush1.bf16.msra.mxu0 0
  %330 = vmatprep.subr.bf16.mxu0 0
  %331 = vmatpush1.bf16.msra.mxu0 0
  %332 = vmatprep.subr.bf16.mxu0 0
  %333 = vmatpush1.bf16.msra.mxu0 0
  %334 = vmatprep.mubr.bf16.mxu0 0
  %335 = vmatmul.mubr.bf16.gmra.mrb[0].mxu0 %v300
  %v336 = vpop.f32.mrb[0].mxu0
  %v337 = vadd.f32 %v273, %v336
  %v338 = vpop.f32.mrb[0].mxu0
  %v339 = vpop.f32.mrb[0].mxu0
  %v340 = vpop.f32.mrb[0].mxu0
  %341 = vdwg.mxu0
  %342 = vst.msk [vmem:[%s7] sm:$0xff] %vm43, %v337
  // Predicated region
  $region30: #{nn_forward.1} parent=0 // pred_check
    _
  $region31: #{nn_forward.1} parent=0 // pred_check_branch
    %344 = sbr.rel (0) target = $region33
  $region32: #{nn_forward.1} parent=0 // pred_region
    _
  $region33: #{nn_forward.1} parent=0 // pred_fallthru
    _
  // Predicated region
  $region34: #{nn_forward.1} parent=0 // pred_check
    _
  $region35: #{nn_forward.1} parent=0 // pred_check_branch
    %346 = sbr.rel (0) target = $region37
  $region36: #{nn_forward.1} parent=0 // pred_region
    _
  $region37: #{nn_forward.1} parent=0 // pred_fallthru
    _

</llo_original>
